<compile_context>
chip_gen: v7x
topology: tpu7x:2x2x1
jax: 0.10.0
libtpu: 0.0.40
codegen_flags: <defaults>
</compile_context>

<pallas_src>
import jax
import jax.numpy as jnp
from jax.experimental import pallas as pl
from jax.experimental.pallas import tpu as pltpu

NUM_ITERATIONS = 5
HIDDEN = 128
LN_EPS = 1e-5  # PyTorch nn.LayerNorm default


def _cdiv(a, b):
    return -(-a // b)


def fractal_kernel(x_ref, w_ref, p_ref, o_ref):
    # x_ref: (TB, H) input tile (f32)
    # w_ref: (H, H)  weight, ALREADY transposed to (in, out); f32 or bf16
    # p_ref: (3, H)  packed params: row 0 = bias, row 1 = gamma, row 2 = beta (f32)
    _, H = x_ref.shape
    x = x_ref[...].astype(jnp.float32)
    w = w_ref[...]                           # keep provided dtype (bf16 fast path)
    p = p_ref[...].astype(jnp.float32)

    # (1, H) parameter rows; broadcast happens at the point of use (no (TB,H) temporaries).
    b_row = p[0:1, :]
    g_row = p[1:2, :]
    beta_row = p[2:3, :]

    inv_h = jnp.float32(1.0 / H)
    mx_dtype = w.dtype

    # num_iterations is a static hyperparameter -> unrolled Python loop.
    for _ in range(NUM_ITERATIONS):
        # Natural MXU orientation: contract x dim 1 with (pre-transposed) w dim 0.
        y = jnp.dot(x.astype(mx_dtype), w, preferred_element_type=jnp.float32)
        y = y + b_row
        # x*x + x
        y = y * y + y
        # LayerNorm over last dim: fused single-pass moments (independent XLU reductions).
        s1 = jnp.sum(y, axis=-1, keepdims=True)
        s2 = jnp.sum(y * y, axis=-1, keepdims=True)
        mean = s1 * inv_h
        var = jnp.maximum(s2 * inv_h - mean * mean, 0.0)  # biased variance, clamped
        y = (y - mean) * jax.lax.rsqrt(var + LN_EPS) * g_row + beta_row
        # ReLU
        x = jnp.maximum(y, 0.0)

    o_ref[...] = x.astype(o_ref.dtype)


def _num_tensorcores_per_chip():
    """2 on v7x-class chips (megacore grid sharding), else 1.  Defensive: default 1."""
    try:
        kind = jax.devices()[0].device_kind.lower()
    except Exception:
        return 1
    return 2 if ("v7" in kind or "tpu7" in kind) else 1


def _pick_tile_b(B, num_cores, max_tile=512):
    """Row-tile size: multiple of 8, <= max_tile.
    1-TC chips: one tile covering the whole batch if it fits (minimize per-step overhead).
    2-TC chips: largest tile giving an EVEN grid-step count so both cores get equal work."""
    r = _cdiv(B, 8)              # batch measured in 8-row sublane units
    rmax = max(1, max_tile // 8)
    if num_cores <= 1 or r <= 1:
        return 8 * min(r, rmax)
    for t in range(min(r, rmax), 0, -1):
        if _cdiv(r, t) % 2 == 0:
            return 8 * t
    return 8 * min(r, rmax)


def fractal_layer(x, weight, bias, gamma, beta, *, tile_b=None, use_bf16_matmul=True):
    """x: (B, H) float32. weight: (H, H) as in nn.Linear (out, in). bias/gamma/beta: (H,)."""
    B, H = x.shape
    assert H == HIDDEN
    if tile_b is None:
        tile_b = _pick_tile_b(B, _num_tensorcores_per_chip())
    assert tile_b % 8 == 0

    # One-time transpose (64 KiB) -> natural MXU contraction inside the unrolled loop.
    w_t = weight.T
    if use_bf16_matmul:
        w_t = w_t.astype(jnp.bfloat16)

    params = jnp.stack([bias, gamma, beta], axis=0)  # (3, H): one DMA / one buffer slot

    grid = (_cdiv(B, tile_b),)  # ragged last block: garbage reads, clipped writes (per-row ops)
    w_bytes = H * H * (2 if use_bf16_matmul else 4)
    cost = pl.CostEstimate(
        flops=2 * NUM_ITERATIONS * B * H * H,
        transcendentals=NUM_ITERATIONS * B,
        bytes_accessed=2 * B * H * 4 + w_bytes + 3 * H * 4,
    )

    out = pl.pallas_call(
        fractal_kernel,
        out_shape=jax.ShapeDtypeStruct((B, H), x.dtype),
        grid_spec=pltpu.PrefetchScalarGridSpec(
            num_scalar_prefetch=0,
            grid=grid,
            in_specs=[
                pl.BlockSpec((tile_b, H), lambda i: (i, 0)),  # x tile
                pl.BlockSpec((H, H), lambda i: (0, 0)),       # weight (resident)
                pl.BlockSpec((3, H), lambda i: (0, 0)),       # packed bias/gamma/beta
            ],
            out_specs=pl.BlockSpec((tile_b, H), lambda i: (i, 0)),
        ),
        compiler_params=pltpu.CompilerParams(
            dimension_semantics=("parallel",),
        ),
        cost_estimate=cost,
    )(x, w_t, params)
    return out


def fractal_layer_ref(x, weight, bias, gamma, beta, use_bf16_matmul=False):
    """Pure-JAX reference matching PyTorch semantics (optionally with matching bf16 casts)."""
    wt = weight.T
    if use_bf16_matmul:
        wt = wt.astype(jnp.bfloat16)
    for _ in range(NUM_ITERATIONS):
        y = jnp.dot(x.astype(wt.dtype), wt, preferred_element_type=jnp.float32) + bias
        y = y * y + y
        mean = jnp.mean(y, axis=-1, keepdims=True)
        var = jnp.mean((y - mean) ** 2, axis=-1, keepdims=True)
        y = (y - mean) / jnp.sqrt(var + LN_EPS) * gamma + beta
        x = jnp.maximum(y, 0.0)
    return x


if __name__ == "__main__":
    key = jax.random.PRNGKey(0)
    k_x, k_w, k_b = jax.random.split(key, 3)

    B, H = 16, HIDDEN
    x = jax.random.normal(k_x, (B, H), dtype=jnp.float32)

    # Deterministic param init mimicking nn.Linear's U(-1/sqrt(H), 1/sqrt(H))
    bound = 1.0 / jnp.sqrt(jnp.float32(H))
    weight = jax.random.uniform(k_w, (H, H), jnp.float32, -bound, bound)
    bias = jax.random.uniform(k_b, (H,), jnp.float32, -bound, bound)
    # nn.LayerNorm default affine init: gamma=1, beta=0
    gamma = jnp.ones((H,), jnp.float32)
    beta = jnp.zeros((H,), jnp.float32)

    # 1) Exact-precision path (f32 MXU operands): 1e-4 against the f32 reference.
    out_f32 = jax.block_until_ready(
        fractal_layer(x, weight, bias, gamma, beta, use_bf16_matmul=False))
    ref_f32 = fractal_layer_ref(x, weight, bias, gamma, beta)
    assert out_f32.shape == (B, H)
    assert jnp.allclose(out_f32, ref_f32, atol=1e-4, rtol=1e-4), "mismatch vs f32 reference"

    # 2) Default performance path (bf16 MXU operands, f32 accumulate): checked against a
    #    reference performing the same casts, at a bf16-appropriate tolerance.
    out_bf = jax.block_until_ready(fractal_layer(x, weight, bias, gamma, beta))
    ref_bf = fractal_layer_ref(x, weight, bias, gamma, beta, use_bf16_matmul=True)
    assert jnp.allclose(out_bf, ref_bf, atol=2e-2, rtol=2e-2), "mismatch vs bf16 reference"

    # 3) Ragged batch (not a multiple of 8 or the tile) with multiple grid steps:
    #    exercises the clipped last block on every chip generation.
    B2 = 300
    x2 = jax.random.normal(k_x, (B2, H), dtype=jnp.float32)
    out2 = jax.block_until_ready(
        fractal_layer(x2, weight, bias, gamma, beta, tile_b=64, use_bf16_matmul=False))
    ref2 = fractal_layer_ref(x2, weight, bias, gamma, beta)
    assert out2.shape == (B2, H)
    assert jnp.allclose(out2, ref2, atol=1e-4, rtol=1e-4), "mismatch vs reference (ragged)"

    print("KERNEL_OK")
</pallas_src>

<mosaic_0001>
module attributes {stable_mosaic.version = 11 : i64} {
  func.func @fractal_kernel(%arg0: i32, %arg1: memref<16x128xf32, #tpu.memory_space<vmem>>, %arg2: memref<128x128xf32, #tpu.memory_space<vmem>>, %arg3: memref<3x128xf32, #tpu.memory_space<vmem>>, %arg4: memref<16x128xf32, #tpu.memory_space<vmem>>) attributes {dimension_semantics = [#tpu.dimension_semantics<parallel>], iteration_bounds = array<i64: 1>, scalar_prefetch = 0 : i64, scratch_operands = 0 : i64, tpu.core_type = #tpu.core_type<tc>, window_params = [{transform_indices = @transform_0, window_bounds = array<i64: 16, 128>}, {pipeline_mode = #tpu.pipeline_mode<synchronous>, transform_indices = @transform_1, window_bounds = array<i64: 128, 128>}, {pipeline_mode = #tpu.pipeline_mode<synchronous>, transform_indices = @transform_2, window_bounds = array<i64: 3, 128>}, {transform_indices = @transform_3, window_bounds = array<i64: 16, 128>}]} {
    %c0 = arith.constant 0 : index
    %c0_0 = arith.constant 0 : index
    %0 = vector.load %arg1[%c0, %c0_0] : memref<16x128xf32, #tpu.memory_space<vmem>>, vector<16x128xf32>
    %c0_1 = arith.constant 0 : index
    %c0_2 = arith.constant 0 : index
    %1 = vector.load %arg2[%c0_1, %c0_2] : memref<128x128xf32, #tpu.memory_space<vmem>>, vector<128x128xf32>
    %c0_3 = arith.constant 0 : index
    %c0_4 = arith.constant 0 : index
    %2 = vector.load %arg3[%c0_3, %c0_4] : memref<3x128xf32, #tpu.memory_space<vmem>>, vector<3x128xf32>
    %3 = vector.extract_strided_slice %2 {offsets = [0, 0], sizes = [1, 128], strides = [1, 1]} : vector<3x128xf32> to vector<1x128xf32>
    %4 = vector.extract_strided_slice %2 {offsets = [1, 0], sizes = [1, 128], strides = [1, 1]} : vector<3x128xf32> to vector<1x128xf32>
    %5 = vector.extract_strided_slice %2 {offsets = [2, 0], sizes = [1, 128], strides = [1, 1]} : vector<3x128xf32> to vector<1x128xf32>
    %cst = arith.constant dense<0.000000e+00> : vector<16x128xf32>
    %6 = tpu.matmul %0, %1, %cst {dimension_numbers = #tpu.dot_dimension_numbers<[1], [0], [0], [1], [0, 0, 1, 1], [], []>} : vector<16x128xf32>, vector<128x128xf32>, vector<16x128xf32> -> vector<16x128xf32>
    %7 = vector.broadcast %3 : vector<1x128xf32> to vector<16x128xf32>
    %8 = arith.addf %6, %7 : vector<16x128xf32>
    %9 = arith.mulf %8, %8 : vector<16x128xf32>
    %10 = arith.addf %9, %8 : vector<16x128xf32>
    %cst_5 = arith.constant dense<0.000000e+00> : vector<16xf32>
    %11 = vector.multi_reduction <add>, %10, %cst_5 [1] : vector<16x128xf32> to vector<16xf32>
    %12 = vector.shape_cast %11 : vector<16xf32> to vector<16x1xf32>
    %13 = arith.mulf %10, %10 : vector<16x128xf32>
    %cst_6 = arith.constant dense<0.000000e+00> : vector<16xf32>
    %14 = vector.multi_reduction <add>, %13, %cst_6 [1] : vector<16x128xf32> to vector<16xf32>
    %15 = vector.shape_cast %14 : vector<16xf32> to vector<16x1xf32>
    %cst_7 = arith.constant 7.812500e-03 : f32
    %16 = vector.broadcast %cst_7 : f32 to vector<16x1xf32>
    %17 = arith.mulf %12, %16 : vector<16x1xf32>
    %cst_8 = arith.constant 7.812500e-03 : f32
    %18 = vector.broadcast %cst_8 : f32 to vector<16x1xf32>
    %19 = arith.mulf %15, %18 : vector<16x1xf32>
    %20 = arith.mulf %17, %17 : vector<16x1xf32>
    %21 = arith.subf %19, %20 : vector<16x1xf32>
    %cst_9 = arith.constant 0.000000e+00 : f32
    %22 = vector.broadcast %cst_9 : f32 to vector<16x1xf32>
    %23 = arith.maximumf %21, %22 : vector<16x1xf32>
    %24 = vector.broadcast %17 : vector<16x1xf32> to vector<16x128xf32>
    %25 = arith.subf %10, %24 : vector<16x128xf32>
    %cst_10 = arith.constant 9.99999974E-6 : f32
    %26 = vector.broadcast %cst_10 : f32 to vector<16x1xf32>
    %27 = arith.addf %23, %26 : vector<16x1xf32>
    %28 = math.rsqrt %27 : vector<16x1xf32>
    %29 = vector.broadcast %28 : vector<16x1xf32> to vector<16x128xf32>
    %30 = arith.mulf %25, %29 : vector<16x128xf32>
    %31 = vector.broadcast %4 : vector<1x128xf32> to vector<16x128xf32>
    %32 = arith.mulf %30, %31 : vector<16x128xf32>
    %33 = vector.broadcast %5 : vector<1x128xf32> to vector<16x128xf32>
    %34 = arith.addf %32, %33 : vector<16x128xf32>
    %cst_11 = arith.constant 0.000000e+00 : f32
    %35 = vector.broadcast %cst_11 : f32 to vector<16x128xf32>
    %36 = arith.maximumf %34, %35 : vector<16x128xf32>
    %cst_12 = arith.constant dense<0.000000e+00> : vector<16x128xf32>
    %37 = tpu.matmul %36, %1, %cst_12 {dimension_numbers = #tpu.dot_dimension_numbers<[1], [0], [0], [1], [0, 0, 1, 1], [], []>} : vector<16x128xf32>, vector<128x128xf32>, vector<16x128xf32> -> vector<16x128xf32>
    %38 = vector.broadcast %3 : vector<1x128xf32> to vector<16x128xf32>
    %39 = arith.addf %37, %38 : vector<16x128xf32>
    %40 = arith.mulf %39, %39 : vector<16x128xf32>
    %41 = arith.addf %40, %39 : vector<16x128xf32>
    %cst_13 = arith.constant dense<0.000000e+00> : vector<16xf32>
    %42 = vector.multi_reduction <add>, %41, %cst_13 [1] : vector<16x128xf32> to vector<16xf32>
    %43 = vector.shape_cast %42 : vector<16xf32> to vector<16x1xf32>
    %44 = arith.mulf %41, %41 : vector<16x128xf32>
    %cst_14 = arith.constant dense<0.000000e+00> : vector<16xf32>
    %45 = vector.multi_reduction <add>, %44, %cst_14 [1] : vector<16x128xf32> to vector<16xf32>
    %46 = vector.shape_cast %45 : vector<16xf32> to vector<16x1xf32>
    %cst_15 = arith.constant 7.812500e-03 : f32
    %47 = vector.broadcast %cst_15 : f32 to vector<16x1xf32>
    %48 = arith.mulf %43, %47 : vector<16x1xf32>
    %cst_16 = arith.constant 7.812500e-03 : f32
    %49 = vector.broadcast %cst_16 : f32 to vector<16x1xf32>
    %50 = arith.mulf %46, %49 : vector<16x1xf32>
    %51 = arith.mulf %48, %48 : vector<16x1xf32>
    %52 = arith.subf %50, %51 : vector<16x1xf32>
    %cst_17 = arith.constant 0.000000e+00 : f32
    %53 = vector.broadcast %cst_17 : f32 to vector<16x1xf32>
    %54 = arith.maximumf %52, %53 : vector<16x1xf32>
    %55 = vector.broadcast %48 : vector<16x1xf32> to vector<16x128xf32>
    %56 = arith.subf %41, %55 : vector<16x128xf32>
    %cst_18 = arith.constant 9.99999974E-6 : f32
    %57 = vector.broadcast %cst_18 : f32 to vector<16x1xf32>
    %58 = arith.addf %54, %57 : vector<16x1xf32>
    %59 = math.rsqrt %58 : vector<16x1xf32>
    %60 = vector.broadcast %59 : vector<16x1xf32> to vector<16x128xf32>
    %61 = arith.mulf %56, %60 : vector<16x128xf32>
    %62 = vector.broadcast %4 : vector<1x128xf32> to vector<16x128xf32>
    %63 = arith.mulf %61, %62 : vector<16x128xf32>
    %64 = vector.broadcast %5 : vector<1x128xf32> to vector<16x128xf32>
    %65 = arith.addf %63, %64 : vector<16x128xf32>
    %cst_19 = arith.constant 0.000000e+00 : f32
    %66 = vector.broadcast %cst_19 : f32 to vector<16x128xf32>
    %67 = arith.maximumf %65, %66 : vector<16x128xf32>
    %cst_20 = arith.constant dense<0.000000e+00> : vector<16x128xf32>
    %68 = tpu.matmul %67, %1, %cst_20 {dimension_numbers = #tpu.dot_dimension_numbers<[1], [0], [0], [1], [0, 0, 1, 1], [], []>} : vector<16x128xf32>, vector<128x128xf32>, vector<16x128xf32> -> vector<16x128xf32>
    %69 = vector.broadcast %3 : vector<1x128xf32> to vector<16x128xf32>
    %70 = arith.addf %68, %69 : vector<16x128xf32>
    %71 = arith.mulf %70, %70 : vector<16x128xf32>
    %72 = arith.addf %71, %70 : vector<16x128xf32>
    %cst_21 = arith.constant dense<0.000000e+00> : vector<16xf32>
    %73 = vector.multi_reduction <add>, %72, %cst_21 [1] : vector<16x128xf32> to vector<16xf32>
    %74 = vector.shape_cast %73 : vector<16xf32> to vector<16x1xf32>
    %75 = arith.mulf %72, %72 : vector<16x128xf32>
    %cst_22 = arith.constant dense<0.000000e+00> : vector<16xf32>
    %76 = vector.multi_reduction <add>, %75, %cst_22 [1] : vector<16x128xf32> to vector<16xf32>
    %77 = vector.shape_cast %76 : vector<16xf32> to vector<16x1xf32>
    %cst_23 = arith.constant 7.812500e-03 : f32
    %78 = vector.broadcast %cst_23 : f32 to vector<16x1xf32>
    %79 = arith.mulf %74, %78 : vector<16x1xf32>
    %cst_24 = arith.constant 7.812500e-03 : f32
    %80 = vector.broadcast %cst_24 : f32 to vector<16x1xf32>
    %81 = arith.mulf %77, %80 : vector<16x1xf32>
    %82 = arith.mulf %79, %79 : vector<16x1xf32>
    %83 = arith.subf %81, %82 : vector<16x1xf32>
    %cst_25 = arith.constant 0.000000e+00 : f32
    %84 = vector.broadcast %cst_25 : f32 to vector<16x1xf32>
    %85 = arith.maximumf %83, %84 : vector<16x1xf32>
    %86 = vector.broadcast %79 : vector<16x1xf32> to vector<16x128xf32>
    %87 = arith.subf %72, %86 : vector<16x128xf32>
    %cst_26 = arith.constant 9.99999974E-6 : f32
    %88 = vector.broadcast %cst_26 : f32 to vector<16x1xf32>
    %89 = arith.addf %85, %88 : vector<16x1xf32>
    %90 = math.rsqrt %89 : vector<16x1xf32>
    %91 = vector.broadcast %90 : vector<16x1xf32> to vector<16x128xf32>
    %92 = arith.mulf %87, %91 : vector<16x128xf32>
    %93 = vector.broadcast %4 : vector<1x128xf32> to vector<16x128xf32>
    %94 = arith.mulf %92, %93 : vector<16x128xf32>
    %95 = vector.broadcast %5 : vector<1x128xf32> to vector<16x128xf32>
    %96 = arith.addf %94, %95 : vector<16x128xf32>
    %cst_27 = arith.constant 0.000000e+00 : f32
    %97 = vector.broadcast %cst_27 : f32 to vector<16x128xf32>
    %98 = arith.maximumf %96, %97 : vector<16x128xf32>
    %cst_28 = arith.constant dense<0.000000e+00> : vector<16x128xf32>
    %99 = tpu.matmul %98, %1, %cst_28 {dimension_numbers = #tpu.dot_dimension_numbers<[1], [0], [0], [1], [0, 0, 1, 1], [], []>} : vector<16x128xf32>, vector<128x128xf32>, vector<16x128xf32> -> vector<16x128xf32>
    %100 = vector.broadcast %3 : vector<1x128xf32> to vector<16x128xf32>
    %101 = arith.addf %99, %100 : vector<16x128xf32>
    %102 = arith.mulf %101, %101 : vector<16x128xf32>
    %103 = arith.addf %102, %101 : vector<16x128xf32>
    %cst_29 = arith.constant dense<0.000000e+00> : vector<16xf32>
    %104 = vector.multi_reduction <add>, %103, %cst_29 [1] : vector<16x128xf32> to vector<16xf32>
    %105 = vector.shape_cast %104 : vector<16xf32> to vector<16x1xf32>
    %106 = arith.mulf %103, %103 : vector<16x128xf32>
    %cst_30 = arith.constant dense<0.000000e+00> : vector<16xf32>
    %107 = vector.multi_reduction <add>, %106, %cst_30 [1] : vector<16x128xf32> to vector<16xf32>
    %108 = vector.shape_cast %107 : vector<16xf32> to vector<16x1xf32>
    %cst_31 = arith.constant 7.812500e-03 : f32
    %109 = vector.broadcast %cst_31 : f32 to vector<16x1xf32>
    %110 = arith.mulf %105, %109 : vector<16x1xf32>
    %cst_32 = arith.constant 7.812500e-03 : f32
    %111 = vector.broadcast %cst_32 : f32 to vector<16x1xf32>
    %112 = arith.mulf %108, %111 : vector<16x1xf32>
    %113 = arith.mulf %110, %110 : vector<16x1xf32>
    %114 = arith.subf %112, %113 : vector<16x1xf32>
    %cst_33 = arith.constant 0.000000e+00 : f32
    %115 = vector.broadcast %cst_33 : f32 to vector<16x1xf32>
    %116 = arith.maximumf %114, %115 : vector<16x1xf32>
    %117 = vector.broadcast %110 : vector<16x1xf32> to vector<16x128xf32>
    %118 = arith.subf %103, %117 : vector<16x128xf32>
    %cst_34 = arith.constant 9.99999974E-6 : f32
    %119 = vector.broadcast %cst_34 : f32 to vector<16x1xf32>
    %120 = arith.addf %116, %119 : vector<16x1xf32>
    %121 = math.rsqrt %120 : vector<16x1xf32>
    %122 = vector.broadcast %121 : vector<16x1xf32> to vector<16x128xf32>
    %123 = arith.mulf %118, %122 : vector<16x128xf32>
    %124 = vector.broadcast %4 : vector<1x128xf32> to vector<16x128xf32>
    %125 = arith.mulf %123, %124 : vector<16x128xf32>
    %126 = vector.broadcast %5 : vector<1x128xf32> to vector<16x128xf32>
    %127 = arith.addf %125, %126 : vector<16x128xf32>
    %cst_35 = arith.constant 0.000000e+00 : f32
    %128 = vector.broadcast %cst_35 : f32 to vector<16x128xf32>
    %129 = arith.maximumf %127, %128 : vector<16x128xf32>
    %cst_36 = arith.constant dense<0.000000e+00> : vector<16x128xf32>
    %130 = tpu.matmul %129, %1, %cst_36 {dimension_numbers = #tpu.dot_dimension_numbers<[1], [0], [0], [1], [0, 0, 1, 1], [], []>} : vector<16x128xf32>, vector<128x128xf32>, vector<16x128xf32> -> vector<16x128xf32>
    %131 = vector.broadcast %3 : vector<1x128xf32> to vector<16x128xf32>
    %132 = arith.addf %130, %131 : vector<16x128xf32>
    %133 = arith.mulf %132, %132 : vector<16x128xf32>
    %134 = arith.addf %133, %132 : vector<16x128xf32>
    %cst_37 = arith.constant dense<0.000000e+00> : vector<16xf32>
    %135 = vector.multi_reduction <add>, %134, %cst_37 [1] : vector<16x128xf32> to vector<16xf32>
    %136 = vector.shape_cast %135 : vector<16xf32> to vector<16x1xf32>
    %137 = arith.mulf %134, %134 : vector<16x128xf32>
    %cst_38 = arith.constant dense<0.000000e+00> : vector<16xf32>
    %138 = vector.multi_reduction <add>, %137, %cst_38 [1] : vector<16x128xf32> to vector<16xf32>
    %139 = vector.shape_cast %138 : vector<16xf32> to vector<16x1xf32>
    %cst_39 = arith.constant 7.812500e-03 : f32
    %140 = vector.broadcast %cst_39 : f32 to vector<16x1xf32>
    %141 = arith.mulf %136, %140 : vector<16x1xf32>
    %cst_40 = arith.constant 7.812500e-03 : f32
    %142 = vector.broadcast %cst_40 : f32 to vector<16x1xf32>
    %143 = arith.mulf %139, %142 : vector<16x1xf32>
    %144 = arith.mulf %141, %141 : vector<16x1xf32>
    %145 = arith.subf %143, %144 : vector<16x1xf32>
    %cst_41 = arith.constant 0.000000e+00 : f32
    %146 = vector.broadcast %cst_41 : f32 to vector<16x1xf32>
    %147 = arith.maximumf %145, %146 : vector<16x1xf32>
    %148 = vector.broadcast %141 : vector<16x1xf32> to vector<16x128xf32>
    %149 = arith.subf %134, %148 : vector<16x128xf32>
    %cst_42 = arith.constant 9.99999974E-6 : f32
    %150 = vector.broadcast %cst_42 : f32 to vector<16x1xf32>
    %151 = arith.addf %147, %150 : vector<16x1xf32>
    %152 = math.rsqrt %151 : vector<16x1xf32>
    %153 = vector.broadcast %152 : vector<16x1xf32> to vector<16x128xf32>
    %154 = arith.mulf %149, %153 : vector<16x128xf32>
    %155 = vector.broadcast %4 : vector<1x128xf32> to vector<16x128xf32>
    %156 = arith.mulf %154, %155 : vector<16x128xf32>
    %157 = vector.broadcast %5 : vector<1x128xf32> to vector<16x128xf32>
    %158 = arith.addf %156, %157 : vector<16x128xf32>
    %cst_43 = arith.constant 0.000000e+00 : f32
    %159 = vector.broadcast %cst_43 : f32 to vector<16x128xf32>
    %160 = arith.maximumf %158, %159 : vector<16x128xf32>
    %c0_44 = arith.constant 0 : index
    %c0_45 = arith.constant 0 : index
    %161 = vector.load %arg4[%c0_44, %c0_45] : memref<16x128xf32, #tpu.memory_space<vmem>>, vector<16x128xf32>
    tpu.vector_store %arg4[%c0_44, %c0_45], %160 {strides = array<i32>} : memref<16x128xf32, #tpu.memory_space<vmem>>, vector<16x128xf32>,
    return
  }
  func.func @transform_0(%arg0: i32) -> (i32, i32) {
    %c0_i32 = arith.constant 0 : i32
    %c0_i32_0 = arith.constant 0 : i32
    return %arg0, %c0_i32 : i32, i32
  }
  func.func @transform_1(%arg0: i32) -> (i32, i32) {
    %c0_i32 = arith.constant 0 : i32
    %c0_i32_0 = arith.constant 0 : i32
    %c0_i32_1 = arith.constant 0 : i32
    return %c0_i32, %c0_i32_0 : i32, i32
  }
  func.func @transform_2(%arg0: i32) -> (i32, i32) {
    %c0_i32 = arith.constant 0 : i32
    %c0_i32_0 = arith.constant 0 : i32
    %c0_i32_1 = arith.constant 0 : i32
    return %c0_i32, %c0_i32_0 : i32, i32
  }
  func.func @transform_3(%arg0: i32) -> (i32, i32) {
    %c0_i32 = arith.constant 0 : i32
    %c0_i32_0 = arith.constant 0 : i32
    return %arg0, %c0_i32 : i32, i32
  }
}

</mosaic_0001>

<llo_original>
// kernel: tpu_custom_call.1
$region0: #{tpu_custom_call.1}
  #allocation0 [shape = 'u32[]', space=smem, size = 0x4, offset = 0x4, fixed_abs, tag = 'smem constant byte address 0x4 - core index']
  #allocation1 [shape = 'u32[144,128]{1,0:T(1,128)}', space=vmem, size = 0x12000, scoped, tag = 'internal scratch']
  %s0 = inlined_call_operand.hbm [shape: f32[16,128], index: 0, kind: input, shape index: {}]
  %s1 = inlined_call_operand.hbm [shape: f32[128,128], index: 1, kind: input, shape index: {}]
  %s2 = inlined_call_operand.vmem [shape: f32[3,128], index: 2, kind: input, shape index: {}]
  %s3 = inlined_call_operand.hbm [shape: f32[16,128], index: 3, kind: output, shape index: {}]
  %s4 = sld [smem:[#allocation0]]
  $region30: #{tpu_custom_call.1} parent=0
    _
  %s6 = ssub.s32 1, %s4
  %s7 = scalar_select 0, %s6, %s4
  $region1: #{tpu_custom_call.1} parent=0
    #allocation2 [shape = 'u8[8192]{0}', space=vmem, size = 0x2000, scoped, tag = 'input window, operand 0, single buffered']
    #allocation3 [shape = 's32[1]{0}', space=sflag, size = 0x4, scoped, tag = 'scoped memory for tpu_custom_call.1']
    #allocation4 [shape = 's32[1]{0}', space=sflag, size = 0x4, scoped, tag = 'scoped memory for tpu_custom_call.1']
    #allocation5 [shape = 'u8[65536]{0}', space=vmem, size = 0x10000, scoped, tag = 'input window, operand 1, single buffered']
    #allocation6 [shape = 's32[1]{0}', space=sflag, size = 0x4, scoped, tag = 'scoped memory for tpu_custom_call.1']
    #allocation7 [shape = 'u8[8192]{0}', space=vmem, size = 0x2000, scoped, tag = 'output window, operand 0, single buffered']
    %8 = vsyncpa [#allocation3], 0
    %9 = vsyncpa [#allocation6], 0
    %10 = vsyncpa [#allocation4], 0
    // Predicated region
    $region2: #{tpu_custom_call.1} parent=1 // pred_check
      _
    $region3: #{tpu_custom_call.1} parent=1 // pred_check_branch
      %12 = sbr.rel (0) target = $region5
    $region4: #{tpu_custom_call.1} parent=1 // pred_region
      %s14 = ssub.s32 256, 256
      %15 = vsyncadd [#allocation3], %s14
      %s16 = sshll.u32 [#allocation2], 4
      %s17 = int_to_ptr.vmem [resolvable:$true] %s16
      %22 = dma.hbm_to_vmem [thread:$0]  %s0, 256, %s17, [#allocation3], 128, 128, 8
    $region5: #{tpu_custom_call.1} parent=1 // pred_fallthru
      _
    // Predicated region
    $region6: #{tpu_custom_call.1} parent=1 // pred_check
      _
    $region7: #{tpu_custom_call.1} parent=1 // pred_check_branch
      %24 = sbr.rel (0) target = $region9
    $region8: #{tpu_custom_call.1} parent=1 // pred_region
      %s26 = ssub.s32 2048, 2048
      %27 = vsyncadd [#allocation6], %s26
      %s28 = sshll.u32 [#allocation5], 4
      %s29 = int_to_ptr.vmem [resolvable:$true] %s28
      %34 = dma.hbm_to_vmem [thread:$0]  %s1, 2048, %s29, [#allocation6], 128, 128, 8
    $region9: #{tpu_custom_call.1} parent=1 // pred_fallthru
      _
    // Predicated region
    $region10: #{tpu_custom_call.1} parent=1 // pred_check
      _
    $region11: #{tpu_custom_call.1} parent=1 // pred_check_branch
      %36 = sbr.rel (0) target = $region13
    $region12: #{tpu_custom_call.1} parent=1 // pred_region
      _
    $region13: #{tpu_custom_call.1} parent=1 // pred_fallthru
      _
    // Predicated region
    $region14: #{tpu_custom_call.1} parent=1 // pred_check
      _
    $region15: #{tpu_custom_call.1} parent=1 // pred_check_branch
      %38 = sbr.rel (0) target = $region17
    $region16: #{tpu_custom_call.1} parent=1 // pred_region
      %39 = dma.done [#allocation3], 256
    $region17: #{tpu_custom_call.1} parent=1 // pred_fallthru
      _
    // Predicated region
    $region18: #{tpu_custom_call.1} parent=1 // pred_check
      _
    $region19: #{tpu_custom_call.1} parent=1 // pred_check_branch
      %41 = sbr.rel (0) target = $region21
    $region20: #{tpu_custom_call.1} parent=1 // pred_region
      %42 = dma.done [#allocation6], 2048
    $region21: #{tpu_custom_call.1} parent=1 // pred_fallthru
      _
    %v43 = vld [vmem:[#allocation2] sm:$0xff]
    %v44 = vld [vmem:[#allocation2 + $0x8] sm:$0xff]
    %v45 = vld [vmem:[#allocation5] sm:$0xff]
    %v46 = vld [vmem:[#allocation5 + $0x8] sm:$0xff]
    %v47 = vld [vmem:[#allocation5 + $0x10] sm:$0xff]
    %v48 = vld [vmem:[#allocation5 + $0x18] sm:$0xff]
    %v49 = vld [vmem:[#allocation5 + $0x20] sm:$0xff]
    %v50 = vld [vmem:[#allocation5 + $0x28] sm:$0xff]
    %v51 = vld [vmem:[#allocation5 + $0x30] sm:$0xff]
    %v52 = vld [vmem:[#allocation5 + $0x38] sm:$0xff]
    %v53 = vld [vmem:[#allocation5 + $0x40] sm:$0xff]
    %v54 = vld [vmem:[#allocation5 + $0x48] sm:$0xff]
    %v55 = vld [vmem:[#allocation5 + $0x50] sm:$0xff]
    %v56 = vld [vmem:[#allocation5 + $0x58] sm:$0xff]
    %v57 = vld [vmem:[#allocation5 + $0x60] sm:$0xff]
    %v58 = vld [vmem:[#allocation5 + $0x68] sm:$0xff]
    %v59 = vld [vmem:[#allocation5 + $0x70] sm:$0xff]
    %v60 = vld [vmem:[#allocation5 + $0x78] sm:$0xff]
    %v61 = vld [vmem:[%s2] sm:$0x7]
    %v62 = vlaneseq
    %v63 = vshrl.u32 %v62, 7
    %v64 = vsub.s32 0, %v63
    %v65 = vrot.slane %v61, %v64
    %66 = vmatprep.subr.mxu0 0.0
    %67 = vmatpush1.msra.mxu0 %v45
    %68 = vmatprep.subr.mxu0 0.0
    %69 = vmatpush1.msra.mxu0 %v46
    %70 = vmatprep.subr.mxu0 0.0
    %71 = vmatpush1.msra.mxu0 %v47
    %72 = vmatprep.subr.mxu0 0.0
    %73 = vmatpush1.msra.mxu0 %v48
    %74 = vmatprep.subr.mxu0 0.0
    %75 = vmatpush1.msra.mxu0 %v49
    %76 = vmatprep.subr.mxu0 0.0
    %77 = vmatpush1.msra.mxu0 %v50
    %78 = vmatprep.subr.mxu0 0.0
    %79 = vmatpush1.msra.mxu0 %v51
    %80 = vmatprep.subr.mxu0 0.0
    %81 = vmatpush1.msra.mxu0 %v52
    %82 = vmatprep.subr.mxu0 0.0
    %83 = vmatpush1.msra.mxu0 %v53
    %84 = vmatprep.subr.mxu0 0.0
    %85 = vmatpush1.msra.mxu0 %v54
    %86 = vmatprep.subr.mxu0 0.0
    %87 = vmatpush1.msra.mxu0 %v55
    %88 = vmatprep.subr.mxu0 0.0
    %89 = vmatpush1.msra.mxu0 %v56
    %90 = vmatprep.subr.mxu0 0.0
    %91 = vmatpush1.msra.mxu0 %v57
    %92 = vmatprep.subr.mxu0 0.0
    %93 = vmatpush1.msra.mxu0 %v58
    %94 = vmatprep.subr.mxu0 0.0
    %95 = vmatpush1.msra.mxu0 %v59
    %96 = vmatprep.subr.mxu0 0.0
    %97 = vmatpush1.msra.mxu0 %v60
    %98 = vmatprep.subr.mxu0 0.0
    %99 = vmatpush1.msra.mxu0 0.0
    %100 = vmatprep.subr.mxu0 0.0
    %101 = vmatpush1.msra.mxu0 0.0
    %102 = vmatprep.subr.mxu0 0.0
    %103 = vmatpush1.msra.mxu0 0.0
    %104 = vmatprep.subr.mxu0 0.0
    %105 = vmatpush1.msra.mxu0 0.0
    %106 = vmatprep.subr.mxu0 0.0
    %107 = vmatpush1.msra.mxu0 0.0
    %108 = vmatprep.subr.mxu0 0.0
    %109 = vmatpush1.msra.mxu0 0.0
    %110 = vmatprep.subr.mxu0 0.0
    %111 = vmatpush1.msra.mxu0 0.0
    %112 = vmatprep.subr.mxu0 0.0
    %113 = vmatpush1.msra.mxu0 0.0
    %114 = vmatprep.subr.mxu0 0.0
    %115 = vmatpush1.msra.mxu0 0.0
    %116 = vmatprep.subr.mxu0 0.0
    %117 = vmatpush1.msra.mxu0 0.0
    %118 = vmatprep.subr.mxu0 0.0
    %119 = vmatpush1.msra.mxu0 0.0
    %120 = vmatprep.subr.mxu0 0.0
    %121 = vmatpush1.msra.mxu0 0.0
    %122 = vmatprep.subr.mxu0 0.0
    %123 = vmatpush1.msra.mxu0 0.0
    %124 = vmatprep.subr.mxu0 0.0
    %125 = vmatpush1.msra.mxu0 0.0
    %126 = vmatprep.subr.mxu0 0.0
    %127 = vmatpush1.msra.mxu0 0.0
    %128 = vmatprep.subr.mxu0 0.0
    %129 = vmatpush1.msra.mxu0 0.0
    %130 = vmatprep.mubr.f32.mxu0 0.0
    %131 = vmatmul.mubr.f32.gmra.mrb[0].mxu0 %v43
    %v132 = vpop.f32.mrb[0].mxu0
    %v133 = vadd.f32 %v65, %v132
    %v134 = vpop.f32.mrb[0].mxu0
    %135 = vmatprep.mubr.f32.mxu0 0.0
    %136 = vmatmul.mubr.f32.gmra.mrb[0].mxu0 %v44
    %v137 = vpop.f32.mrb[0].mxu0
    %v138 = vadd.f32 %v65, %v137
    %v139 = vpop.f32.mrb[0].mxu0
    %140 = vdwg.mxu0
    %v141 = vmul.f32 %v133, %v133
    %v142 = vmul.f32 %v138, %v138
    %v143 = vadd.f32 %v141, %v133
    %v144 = vadd.f32 %v142, %v138
    %145 = vadd.xlane.f32.xlu0 %v143
    %v146 = vpop.xlane.xlu0 %145
    %147 = vadd.xlane.f32.xlu0 %v144
    %v148 = vpop.xlane.xlu0 %147
    %v149 = vmul.f32 %v143, %v143
    %v150 = vmul.f32 %v144, %v144
    %151 = vadd.xlane.f32.xlu0 %v149
    %v152 = vpop.xlane.xlu0 %151
    %153 = vadd.xlane.f32.xlu0 %v150
    %v154 = vpop.xlane.xlu0 %153
    %v155 = vmul.f32 %v146, 0.0078125
    %v156 = vmul.f32 %v148, 0.0078125
    %v157 = vmul.f32 %v152, 0.0078125
    %v158 = vmul.f32 %v154, 0.0078125
    %v159 = vmul.f32 %v155, %v155
    %v160 = vmul.f32 %v156, %v156
    %v161 = vsub.f32 %v157, %v159
    %v162 = vsub.f32 %v158, %v160
    %v163 = vmax.f32 %v161, 0.0
    %v164 = vmax.f32 %v162, 0.0
    %v165 = vsub.f32 %v143, %v155
    %v166 = vsub.f32 %v144, %v156
    %v167 = vadd.f32 %v163, 1e-05
    %v168 = vadd.f32 %v164, 1e-05
    %v169 = vrsqrt.pop %v167
    %v170 = vrsqrt.pop %v168
    %v171 = vmul.f32 %v165, %v169
    %v172 = vmul.f32 %v166, %v170
    %v173 = vlaneseq
    %v174 = vshrl.u32 %v173, 7
    %v175 = vsub.s32 1, %v174
    %v176 = vrot.slane %v61, %v175
    %v177 = vmul.f32 %v171, %v176
    %v178 = vmul.f32 %v172, %v176
    %v179 = vlaneseq
    %v180 = vshrl.u32 %v179, 7
    %v181 = vsub.s32 2, %v180
    %v182 = vrot.slane %v61, %v181
    %v183 = vadd.f32 %v177, %v182
    %v184 = vadd.f32 %v178, %v182
    %v185 = vmax.f32 %v183, 0.0
    %v186 = vmax.f32 %v184, 0.0
    %187 = vmatprep.subr.mxu0 0.0
    %188 = vmatpush1.msra.mxu0 %v45
    %189 = vmatprep.subr.mxu0 0.0
    %190 = vmatpush1.msra.mxu0 %v46
    %191 = vmatprep.subr.mxu0 0.0
    %192 = vmatpush1.msra.mxu0 %v47
    %193 = vmatprep.subr.mxu0 0.0
    %194 = vmatpush1.msra.mxu0 %v48
    %195 = vmatprep.subr.mxu0 0.0
    %196 = vmatpush1.msra.mxu0 %v49
    %197 = vmatprep.subr.mxu0 0.0
    %198 = vmatpush1.msra.mxu0 %v50
    %199 = vmatprep.subr.mxu0 0.0
    %200 = vmatpush1.msra.mxu0 %v51
    %201 = vmatprep.subr.mxu0 0.0
    %202 = vmatpush1.msra.mxu0 %v52
    %203 = vmatprep.subr.mxu0 0.0
    %204 = vmatpush1.msra.mxu0 %v53
    %205 = vmatprep.subr.mxu0 0.0
    %206 = vmatpush1.msra.mxu0 %v54
    %207 = vmatprep.subr.mxu0 0.0
    %208 = vmatpush1.msra.mxu0 %v55
    %209 = vmatprep.subr.mxu0 0.0
    %210 = vmatpush1.msra.mxu0 %v56
    %211 = vmatprep.subr.mxu0 0.0
    %212 = vmatpush1.msra.mxu0 %v57
    %213 = vmatprep.subr.mxu0 0.0
    %214 = vmatpush1.msra.mxu0 %v58
    %215 = vmatprep.subr.mxu0 0.0
    %216 = vmatpush1.msra.mxu0 %v59
    %217 = vmatprep.subr.mxu0 0.0
    %218 = vmatpush1.msra.mxu0 %v60
    %219 = vmatprep.subr.mxu0 0.0
    %220 = vmatpush1.msra.mxu0 0.0
    %221 = vmatprep.subr.mxu0 0.0
    %222 = vmatpush1.msra.mxu0 0.0
    %223 = vmatprep.subr.mxu0 0.0
    %224 = vmatpush1.msra.mxu0 0.0
    %225 = vmatprep.subr.mxu0 0.0
    %226 = vmatpush1.msra.mxu0 0.0
    %227 = vmatprep.subr.mxu0 0.0
    %228 = vmatpush1.msra.mxu0 0.0
    %229 = vmatprep.subr.mxu0 0.0
    %230 = vmatpush1.msra.mxu0 0.0
    %231 = vmatprep.subr.mxu0 0.0
    %232 = vmatpush1.msra.mxu0 0.0
    %233 = vmatprep.subr.mxu0 0.0
    %234 = vmatpush1.msra.mxu0 0.0
    %235 = vmatprep.subr.mxu0 0.0
    %236 = vmatpush1.msra.mxu0 0.0
    %237 = vmatprep.subr.mxu0 0.0
    %238 = vmatpush1.msra.mxu0 0.0
    %239 = vmatprep.subr.mxu0 0.0
    %240 = vmatpush1.msra.mxu0 0.0
    %241 = vmatprep.subr.mxu0 0.0
    %242 = vmatpush1.msra.mxu0 0.0
    %243 = vmatprep.subr.mxu0 0.0
    %244 = vmatpush1.msra.mxu0 0.0
    %245 = vmatprep.subr.mxu0 0.0
    %246 = vmatpush1.msra.mxu0 0.0
    %247 = vmatprep.subr.mxu0 0.0
    %248 = vmatpush1.msra.mxu0 0.0
    %249 = vmatprep.subr.mxu0 0.0
    %250 = vmatpush1.msra.mxu0 0.0
    %251 = vmatprep.mubr.f32.mxu0 0.0
    %252 = vmatmul.mubr.f32.gmra.mrb[0].mxu0 %v185
    %v253 = vpop.f32.mrb[0].mxu0
    %v254 = vadd.f32 %v65, %v253
    %v255 = vpop.f32.mrb[0].mxu0
    %256 = vmatprep.mubr.f32.mxu0 0.0
    %257 = vmatmul.mubr.f32.gmra.mrb[0].mxu0 %v186
    %v258 = vpop.f32.mrb[0].mxu0
    %v259 = vadd.f32 %v65, %v258
    %v260 = vpop.f32.mrb[0].mxu0
    %261 = vdwg.mxu0
    %v262 = vmul.f32 %v254, %v254
    %v263 = vmul.f32 %v259, %v259
    %v264 = vadd.f32 %v262, %v254
    %v265 = vadd.f32 %v263, %v259
    %266 = vadd.xlane.f32.xlu0 %v264
    %v267 = vpop.xlane.xlu0 %266
    %268 = vadd.xlane.f32.xlu0 %v265
    %v269 = vpop.xlane.xlu0 %268
    %v270 = vmul.f32 %v264, %v264
    %v271 = vmul.f32 %v265, %v265
    %272 = vadd.xlane.f32.xlu0 %v270
    %v273 = vpop.xlane.xlu0 %272
    %274 = vadd.xlane.f32.xlu0 %v271
    %v275 = vpop.xlane.xlu0 %274
    %v276 = vmul.f32 %v267, 0.0078125
    %v277 = vmul.f32 %v269, 0.0078125
    %v278 = vmul.f32 %v273, 0.0078125
    %v279 = vmul.f32 %v275, 0.0078125
    %v280 = vmul.f32 %v276, %v276
    %v281 = vmul.f32 %v277, %v277
    %v282 = vsub.f32 %v278, %v280
    %v283 = vsub.f32 %v279, %v281
    %v284 = vmax.f32 %v282, 0.0
    %v285 = vmax.f32 %v283, 0.0
    %v286 = vsub.f32 %v264, %v276
    %v287 = vsub.f32 %v265, %v277
    %v288 = vadd.f32 %v284, 1e-05
    %v289 = vadd.f32 %v285, 1e-05
    %v290 = vrsqrt.pop %v288
    %v291 = vrsqrt.pop %v289
    %v292 = vmul.f32 %v286, %v290
    %v293 = vmul.f32 %v287, %v291
    %v294 = vmul.f32 %v292, %v176
    %v295 = vmul.f32 %v293, %v176
    %v296 = vadd.f32 %v294, %v182
    %v297 = vadd.f32 %v295, %v182
    %v298 = vmax.f32 %v296, 0.0
    %v299 = vmax.f32 %v297, 0.0
    %300 = vmatprep.subr.mxu0 0.0
    %301 = vmatpush1.msra.mxu0 %v45
    %302 = vmatprep.subr.mxu0 0.0
    %303 = vmatpush1.msra.mxu0 %v46
    %304 = vmatprep.subr.mxu0 0.0
    %305 = vmatpush1.msra.mxu0 %v47
    %306 = vmatprep.subr.mxu0 0.0
    %307 = vmatpush1.msra.mxu0 %v48
    %308 = vmatprep.subr.mxu0 0.0
    %309 = vmatpush1.msra.mxu0 %v49
    %310 = vmatprep.subr.mxu0 0.0
    %311 = vmatpush1.msra.mxu0 %v50
    %312 = vmatprep.subr.mxu0 0.0
    %313 = vmatpush1.msra.mxu0 %v51
    %314 = vmatprep.subr.mxu0 0.0
    %315 = vmatpush1.msra.mxu0 %v52
    %316 = vmatprep.subr.mxu0 0.0
    %317 = vmatpush1.msra.mxu0 %v53
    %318 = vmatprep.subr.mxu0 0.0
    %319 = vmatpush1.msra.mxu0 %v54
    %320 = vmatprep.subr.mxu0 0.0
    %321 = vmatpush1.msra.mxu0 %v55
    %322 = vmatprep.subr.mxu0 0.0
    %323 = vmatpush1.msra.mxu0 %v56
    %324 = vmatprep.subr.mxu0 0.0
    %325 = vmatpush1.msra.mxu0 %v57
    %326 = vmatprep.subr.mxu0 0.0
    %327 = vmatpush1.msra.mxu0 %v58
    %328 = vmatprep.subr.mxu0 0.0
    %329 = vmatpush1.msra.mxu0 %v59
    %330 = vmatprep.subr.mxu0 0.0
    %331 = vmatpush1.msra.mxu0 %v60
    %332 = vmatprep.subr.mxu0 0.0
    %333 = vmatpush1.msra.mxu0 0.0
    %334 = vmatprep.subr.mxu0 0.0
    %335 = vmatpush1.msra.mxu0 0.0
    %336 = vmatprep.subr.mxu0 0.0
    %337 = vmatpush1.msra.mxu0 0.0
    %338 = vmatprep.subr.mxu0 0.0
    %339 = vmatpush1.msra.mxu0 0.0
    %340 = vmatprep.subr.mxu0 0.0
    %341 = vmatpush1.msra.mxu0 0.0
    %342 = vmatprep.subr.mxu0 0.0
    %343 = vmatpush1.msra.mxu0 0.0
    %344 = vmatprep.subr.mxu0 0.0
    %345 = vmatpush1.msra.mxu0 0.0
    %346 = vmatprep.subr.mxu0 0.0
    %347 = vmatpush1.msra.mxu0 0.0
    %348 = vmatprep.subr.mxu0 0.0
    %349 = vmatpush1.msra.mxu0 0.0
    %350 = vmatprep.subr.mxu0 0.0
    %351 = vmatpush1.msra.mxu0 0.0
    %352 = vmatprep.subr.mxu0 0.0
    %353 = vmatpush1.msra.mxu0 0.0
    %354 = vmatprep.subr.mxu0 0.0
    %355 = vmatpush1.msra.mxu0 0.0
    %356 = vmatprep.subr.mxu0 0.0
    %357 = vmatpush1.msra.mxu0 0.0
    %358 = vmatprep.subr.mxu0 0.0
    %359 = vmatpush1.msra.mxu0 0.0
    %360 = vmatprep.subr.mxu0 0.0
    %361 = vmatpush1.msra.mxu0 0.0
    %362 = vmatprep.subr.mxu0 0.0
    %363 = vmatpush1.msra.mxu0 0.0
    %364 = vmatprep.mubr.f32.mxu0 0.0
    %365 = vmatmul.mubr.f32.gmra.mrb[0].mxu0 %v298
    %v366 = vpop.f32.mrb[0].mxu0
    %v367 = vadd.f32 %v65, %v366
    %v368 = vpop.f32.mrb[0].mxu0
    %369 = vmatprep.mubr.f32.mxu0 0.0
    %370 = vmatmul.mubr.f32.gmra.mrb[0].mxu0 %v299
    %v371 = vpop.f32.mrb[0].mxu0
    %v372 = vadd.f32 %v65, %v371
    %v373 = vpop.f32.mrb[0].mxu0
    %374 = vdwg.mxu0
    %v375 = vmul.f32 %v367, %v367
    %v376 = vmul.f32 %v372, %v372
    %v377 = vadd.f32 %v375, %v367
    %v378 = vadd.f32 %v376, %v372
    %379 = vadd.xlane.f32.xlu0 %v377
    %v380 = vpop.xlane.xlu0 %379
    %381 = vadd.xlane.f32.xlu0 %v378
    %v382 = vpop.xlane.xlu0 %381
    %v383 = vmul.f32 %v377, %v377
    %v384 = vmul.f32 %v378, %v378
    %385 = vadd.xlane.f32.xlu0 %v383
    %v386 = vpop.xlane.xlu0 %385
    %387 = vadd.xlane.f32.xlu0 %v384
    %v388 = vpop.xlane.xlu0 %387
    %v389 = vmul.f32 %v380, 0.0078125
    %v390 = vmul.f32 %v382, 0.0078125
    %v391 = vmul.f32 %v386, 0.0078125
    %v392 = vmul.f32 %v388, 0.0078125
    %v393 = vmul.f32 %v389, %v389
    %v394 = vmul.f32 %v390, %v390
    %v395 = vsub.f32 %v391, %v393
    %v396 = vsub.f32 %v392, %v394
    %v397 = vmax.f32 %v395, 0.0
    %v398 = vmax.f32 %v396, 0.0
    %v399 = vsub.f32 %v377, %v389
    %v400 = vsub.f32 %v378, %v390
    %v401 = vadd.f32 %v397, 1e-05
    %v402 = vadd.f32 %v398, 1e-05
    %v403 = vrsqrt.pop %v401
    %v404 = vrsqrt.pop %v402
    %v405 = vmul.f32 %v399, %v403
    %v406 = vmul.f32 %v400, %v404
    %v407 = vmul.f32 %v405, %v176
    %v408 = vmul.f32 %v406, %v176
    %v409 = vadd.f32 %v407, %v182
    %v410 = vadd.f32 %v408, %v182
    %v411 = vmax.f32 %v409, 0.0
    %v412 = vmax.f32 %v410, 0.0
    %413 = vmatprep.subr.mxu0 0.0
    %414 = vmatpush1.msra.mxu0 %v45
    %415 = vmatprep.subr.mxu0 0.0
    %416 = vmatpush1.msra.mxu0 %v46
    %417 = vmatprep.subr.mxu0 0.0
    %418 = vmatpush1.msra.mxu0 %v47
    %419 = vmatprep.subr.mxu0 0.0
    %420 = vmatpush1.msra.mxu0 %v48
    %421 = vmatprep.subr.mxu0 0.0
    %422 = vmatpush1.msra.mxu0 %v49
    %423 = vmatprep.subr.mxu0 0.0
    %424 = vmatpush1.msra.mxu0 %v50
    %425 = vmatprep.subr.mxu0 0.0
    %426 = vmatpush1.msra.mxu0 %v51
    %427 = vmatprep.subr.mxu0 0.0
    %428 = vmatpush1.msra.mxu0 %v52
    %429 = vmatprep.subr.mxu0 0.0
    %430 = vmatpush1.msra.mxu0 %v53
    %431 = vmatprep.subr.mxu0 0.0
    %432 = vmatpush1.msra.mxu0 %v54
    %433 = vmatprep.subr.mxu0 0.0
    %434 = vmatpush1.msra.mxu0 %v55
    %435 = vmatprep.subr.mxu0 0.0
    %436 = vmatpush1.msra.mxu0 %v56
    %437 = vmatprep.subr.mxu0 0.0
    %438 = vmatpush1.msra.mxu0 %v57
    %439 = vmatprep.subr.mxu0 0.0
    %440 = vmatpush1.msra.mxu0 %v58
    %441 = vmatprep.subr.mxu0 0.0
    %442 = vmatpush1.msra.mxu0 %v59
    %443 = vmatprep.subr.mxu0 0.0
    %444 = vmatpush1.msra.mxu0 %v60
    %445 = vmatprep.subr.mxu0 0.0
    %446 = vmatpush1.msra.mxu0 0.0
    %447 = vmatprep.subr.mxu0 0.0
    %448 = vmatpush1.msra.mxu0 0.0
    %449 = vmatprep.subr.mxu0 0.0
    %450 = vmatpush1.msra.mxu0 0.0
    %451 = vmatprep.subr.mxu0 0.0
    %452 = vmatpush1.msra.mxu0 0.0
    %453 = vmatprep.subr.mxu0 0.0
    %454 = vmatpush1.msra.mxu0 0.0
    %455 = vmatprep.subr.mxu0 0.0
    %456 = vmatpush1.msra.mxu0 0.0
    %457 = vmatprep.subr.mxu0 0.0
    %458 = vmatpush1.msra.mxu0 0.0
    %459 = vmatprep.subr.mxu0 0.0
    %460 = vmatpush1.msra.mxu0 0.0
    %461 = vmatprep.subr.mxu0 0.0
    %462 = vmatpush1.msra.mxu0 0.0
    %463 = vmatprep.subr.mxu0 0.0
    %464 = vmatpush1.msra.mxu0 0.0
    %465 = vmatprep.subr.mxu0 0.0
    %466 = vmatpush1.msra.mxu0 0.0
    %467 = vmatprep.subr.mxu0 0.0
    %468 = vmatpush1.msra.mxu0 0.0
    %469 = vmatprep.subr.mxu0 0.0
    %470 = vmatpush1.msra.mxu0 0.0
    %471 = vmatprep.subr.mxu0 0.0
    %472 = vmatpush1.msra.mxu0 0.0
    %473 = vmatprep.subr.mxu0 0.0
    %474 = vmatpush1.msra.mxu0 0.0
    %475 = vmatprep.subr.mxu0 0.0
    %476 = vmatpush1.msra.mxu0 0.0
    %477 = vmatprep.mubr.f32.mxu0 0.0
    %478 = vmatmul.mubr.f32.gmra.mrb[0].mxu0 %v411
    %v479 = vpop.f32.mrb[0].mxu0
    %v480 = vadd.f32 %v65, %v479
    %v481 = vpop.f32.mrb[0].mxu0
    %482 = vmatprep.mubr.f32.mxu0 0.0
    %483 = vmatmul.mubr.f32.gmra.mrb[0].mxu0 %v412
    %v484 = vpop.f32.mrb[0].mxu0
    %v485 = vadd.f32 %v65, %v484
    %v486 = vpop.f32.mrb[0].mxu0
    %487 = vdwg.mxu0
    %v488 = vmul.f32 %v480, %v480
    %v489 = vmul.f32 %v485, %v485
    %v490 = vadd.f32 %v488, %v480
    %v491 = vadd.f32 %v489, %v485
    %492 = vadd.xlane.f32.xlu0 %v490
    %v493 = vpop.xlane.xlu0 %492
    %494 = vadd.xlane.f32.xlu0 %v491
    %v495 = vpop.xlane.xlu0 %494
    %v496 = vmul.f32 %v490, %v490
    %v497 = vmul.f32 %v491, %v491
    %498 = vadd.xlane.f32.xlu0 %v496
    %v499 = vpop.xlane.xlu0 %498
    %500 = vadd.xlane.f32.xlu0 %v497
    %v501 = vpop.xlane.xlu0 %500
    %v502 = vmul.f32 %v493, 0.0078125
    %v503 = vmul.f32 %v495, 0.0078125
    %v504 = vmul.f32 %v499, 0.0078125
    %v505 = vmul.f32 %v501, 0.0078125
    %v506 = vmul.f32 %v502, %v502
    %v507 = vmul.f32 %v503, %v503
    %v508 = vsub.f32 %v504, %v506
    %v509 = vsub.f32 %v505, %v507
    %v510 = vmax.f32 %v508, 0.0
    %v511 = vmax.f32 %v509, 0.0
    %v512 = vsub.f32 %v490, %v502
    %v513 = vsub.f32 %v491, %v503
    %v514 = vadd.f32 %v510, 1e-05
    %v515 = vadd.f32 %v511, 1e-05
    %v516 = vrsqrt.pop %v514
    %v517 = vrsqrt.pop %v515
    %v518 = vmul.f32 %v512, %v516
    %v519 = vmul.f32 %v513, %v517
    %v520 = vmul.f32 %v518, %v176
    %v521 = vmul.f32 %v519, %v176
    %v522 = vadd.f32 %v520, %v182
    %v523 = vadd.f32 %v521, %v182
    %v524 = vmax.f32 %v522, 0.0
    %v525 = vmax.f32 %v523, 0.0
    %526 = vmatprep.subr.mxu0 0.0
    %527 = vmatpush1.msra.mxu0 %v45
    %528 = vmatprep.subr.mxu0 0.0
    %529 = vmatpush1.msra.mxu0 %v46
    %530 = vmatprep.subr.mxu0 0.0
    %531 = vmatpush1.msra.mxu0 %v47
    %532 = vmatprep.subr.mxu0 0.0
    %533 = vmatpush1.msra.mxu0 %v48
    %534 = vmatprep.subr.mxu0 0.0
    %535 = vmatpush1.msra.mxu0 %v49
    %536 = vmatprep.subr.mxu0 0.0
    %537 = vmatpush1.msra.mxu0 %v50
    %538 = vmatprep.subr.mxu0 0.0
    %539 = vmatpush1.msra.mxu0 %v51
    %540 = vmatprep.subr.mxu0 0.0
    %541 = vmatpush1.msra.mxu0 %v52
    %542 = vmatprep.subr.mxu0 0.0
    %543 = vmatpush1.msra.mxu0 %v53
    %544 = vmatprep.subr.mxu0 0.0
    %545 = vmatpush1.msra.mxu0 %v54
    %546 = vmatprep.subr.mxu0 0.0
    %547 = vmatpush1.msra.mxu0 %v55
    %548 = vmatprep.subr.mxu0 0.0
    %549 = vmatpush1.msra.mxu0 %v56
    %550 = vmatprep.subr.mxu0 0.0
    %551 = vmatpush1.msra.mxu0 %v57
    %552 = vmatprep.subr.mxu0 0.0
    %553 = vmatpush1.msra.mxu0 %v58
    %554 = vmatprep.subr.mxu0 0.0
    %555 = vmatpush1.msra.mxu0 %v59
    %556 = vmatprep.subr.mxu0 0.0
    %557 = vmatpush1.msra.mxu0 %v60
    %558 = vmatprep.subr.mxu0 0.0
    %559 = vmatpush1.msra.mxu0 0.0
    %560 = vmatprep.subr.mxu0 0.0
    %561 = vmatpush1.msra.mxu0 0.0
    %562 = vmatprep.subr.mxu0 0.0
    %563 = vmatpush1.msra.mxu0 0.0
    %564 = vmatprep.subr.mxu0 0.0
    %565 = vmatpush1.msra.mxu0 0.0
    %566 = vmatprep.subr.mxu0 0.0
    %567 = vmatpush1.msra.mxu0 0.0
    %568 = vmatprep.subr.mxu0 0.0
    %569 = vmatpush1.msra.mxu0 0.0
    %570 = vmatprep.subr.mxu0 0.0
    %571 = vmatpush1.msra.mxu0 0.0
    %572 = vmatprep.subr.mxu0 0.0
    %573 = vmatpush1.msra.mxu0 0.0
    %574 = vmatprep.subr.mxu0 0.0
    %575 = vmatpush1.msra.mxu0 0.0
    %576 = vmatprep.subr.mxu0 0.0
    %577 = vmatpush1.msra.mxu0 0.0
    %578 = vmatprep.subr.mxu0 0.0
    %579 = vmatpush1.msra.mxu0 0.0
    %580 = vmatprep.subr.mxu0 0.0
    %581 = vmatpush1.msra.mxu0 0.0
    %582 = vmatprep.subr.mxu0 0.0
    %583 = vmatpush1.msra.mxu0 0.0
    %584 = vmatprep.subr.mxu0 0.0
    %585 = vmatpush1.msra.mxu0 0.0
    %586 = vmatprep.subr.mxu0 0.0
    %587 = vmatpush1.msra.mxu0 0.0
    %588 = vmatprep.subr.mxu0 0.0
    %589 = vmatpush1.msra.mxu0 0.0
    %590 = vmatprep.mubr.f32.mxu0 0.0
    %591 = vmatmul.mubr.f32.gmra.mrb[0].mxu0 %v524
    %v592 = vpop.f32.mrb[0].mxu0
    %v593 = vadd.f32 %v65, %v592
    %v594 = vpop.f32.mrb[0].mxu0
    %595 = vmatprep.mubr.f32.mxu0 0.0
    %596 = vmatmul.mubr.f32.gmra.mrb[0].mxu0 %v525
    %v597 = vpop.f32.mrb[0].mxu0
    %v598 = vadd.f32 %v65, %v597
    %v599 = vpop.f32.mrb[0].mxu0
    %600 = vdwg.mxu0
    %v601 = vmul.f32 %v593, %v593
    %v602 = vmul.f32 %v598, %v598
    %v603 = vadd.f32 %v601, %v593
    %v604 = vadd.f32 %v602, %v598
    %605 = vadd.xlane.f32.xlu0 %v603
    %v606 = vpop.xlane.xlu0 %605
    %607 = vadd.xlane.f32.xlu0 %v604
    %v608 = vpop.xlane.xlu0 %607
    %v609 = vmul.f32 %v603, %v603
    %v610 = vmul.f32 %v604, %v604
    %611 = vadd.xlane.f32.xlu0 %v609
    %v612 = vpop.xlane.xlu0 %611
    %613 = vadd.xlane.f32.xlu0 %v610
    %v614 = vpop.xlane.xlu0 %613
    %v615 = vmul.f32 %v606, 0.0078125
    %v616 = vmul.f32 %v608, 0.0078125
    %v617 = vmul.f32 %v612, 0.0078125
    %v618 = vmul.f32 %v614, 0.0078125
    %v619 = vmul.f32 %v615, %v615
    %v620 = vmul.f32 %v616, %v616
    %v621 = vsub.f32 %v617, %v619
    %v622 = vsub.f32 %v618, %v620
    %v623 = vmax.f32 %v621, 0.0
    %v624 = vmax.f32 %v622, 0.0
    %v625 = vsub.f32 %v603, %v615
    %v626 = vsub.f32 %v604, %v616
    %v627 = vadd.f32 %v623, 1e-05
    %v628 = vadd.f32 %v624, 1e-05
    %v629 = vrsqrt.pop %v627
    %v630 = vrsqrt.pop %v628
    %v631 = vmul.f32 %v625, %v629
    %v632 = vmul.f32 %v626, %v630
    %v633 = vmul.f32 %v631, %v176
    %v634 = vmul.f32 %v632, %v176
    %v635 = vadd.f32 %v633, %v182
    %v636 = vadd.f32 %v634, %v182
    %v637 = vmax.f32 %v635, 0.0
    %v638 = vmax.f32 %v636, 0.0
    %639 = vst [vmem:[#allocation7] sm:$0xff] %v637
    %640 = vst [vmem:[#allocation7 + $0x8] sm:$0xff] %v638
    // Predicated region
    $region22: #{tpu_custom_call.1} parent=1 // pred_check
      _
    $region23: #{tpu_custom_call.1} parent=1 // pred_check_branch
      %642 = sbr.rel (0) target = $region25
    $region24: #{tpu_custom_call.1} parent=1 // pred_region
      %s644 = ssub.s32 256, 256
      %645 = vsyncadd [#allocation4], %s644
      %s646 = sshll.u32 [#allocation7], 4
      %s647 = int_to_ptr.vmem [resolvable:$true] %s646
      %652 = dma.vmem_to_hbm [thread:$0]  %s647, 256, %s3, [#allocation4], 128, 128, 8
    $region25: #{tpu_custom_call.1} parent=1 // pred_fallthru
      _
    // Predicated region
    $region26: #{tpu_custom_call.1} parent=1 // pred_check
      _
    $region27: #{tpu_custom_call.1} parent=1 // pred_check_branch
      %654 = sbr.rel (0) target = $region29
    $region28: #{tpu_custom_call.1} parent=1 // pred_region
      %655 = dma.done [#allocation4], 256
    $region29: #{tpu_custom_call.1} parent=1 // pred_fallthru
      _
    %656 = vsyncpa [#allocation3], 1
    %657 = vsyncpa [#allocation6], 1
    %658 = vsyncpa [#allocation4], 1

</llo_original>
